<compile_context>
chip_gen: v5e
topology: v5e:2x2
jax: 0.10.0
libtpu: 0.0.40
codegen_flags: <defaults>
</compile_context>

<pallas_src>
import functools

import jax
import jax.numpy as jnp
import numpy as np
from jax.experimental import pallas as pl
from jax.experimental.pallas import tpu as pltpu

ALPHA = 0.9
NUM_HIDDEN = 8  # hidden_layer1 .. hidden_layer8


def _mlp_kernel(x_ref, w_in_ref, b_in_ref, ws_ref, bs_ref, w_out_ref, b_out_ref,
                o_ref, *, num_hidden, act_dtype):
    # x tile (transposed): (2, TM) — row 0 = x0, row 1 = x1, batch on lanes.
    x0 = x_ref[0:1, :]                       # (1, TM) f32
    x1 = x_ref[1:2, :]                       # (1, TM) f32

    # Input layer (K=2 contraction) as two VPU broadcast FMAs instead of an
    # MXU matmul:  z = W[:,0]*x0 + W[:,1]*x1 + b   -> (NN, TM), f32.
    w_in = w_in_ref[...]                     # (NN, 2), PyTorch (out, in)
    z = w_in[:, 0:1] * x0 + w_in[:, 1:2] * x1 + b_in_ref[...]
    if act_dtype != jnp.float32:
        z = z.astype(act_dtype)
    out = z * jnp.tanh(z)                    # (NN, TM), lane-dense, act_dtype

    # 8 hidden layers; weights stacked (NUM_HIDDEN, NN, NN) in (out, in) form.
    # MXU accumulates in f32; in bf16 mode the activation / tanh chain runs on
    # the bf16 VPU/EUP path (v6e/v7x) and halves vld/vst bytes.
    for i in range(num_hidden):
        z = jnp.dot(ws_ref[i], out,
                    preferred_element_type=jnp.float32) + bs_ref[i]   # (NN,TM) f32
        if act_dtype != jnp.float32:
            z = z.astype(act_dtype)
        out = z * jnp.tanh(z)

    # Output layer (M=1): VPU multiply by the w_out column + sublane-sum (XLU)
    # instead of a 1-row MXU matmul; bias is an SMEM scalar.
    out_f32 = out if out.dtype == jnp.float32 else out.astype(jnp.float32)
    out_nn = jnp.sum(w_out_ref[...] * out_f32, axis=0, keepdims=True) \
        + b_out_ref[0, 0]                    # (1, TM) f32

    # xs = x0**alpha * x1 * (1 - x1) on lane-dense (1, TM) rows.
    # x**alpha lowers to exp(alpha*log(x)); guard x0 <= 0 (boundary points) so
    # x0 == 0 -> 0 exactly (matches torch) and negatives don't produce NaN.
    x0_safe = jnp.maximum(x0, jnp.float32(1e-30))
    x0_pow = jnp.where(x0 > 0.0, jnp.exp(ALPHA * jnp.log(x0_safe)),
                       jnp.float32(0.0))
    xs = x0_pow * (x1 * (1.0 - x1))

    o_ref[...] = xs * out_nn                 # (1, TM) unmasked lane-dense store


def _pick_tile_m(N, cap=4096):
    """Largest lane-aligned tile <= cap that divides N and yields >= 2 grid
    steps (so the 'parallel' axis shards across v7x's two TensorCores),
    preferring an even step count.  Falls back to the whole batch when N is
    too small / not lane-aligned (grid = 1)."""
    if N < 256 or N % 128 != 0:
        return N
    start = min(cap, N // 2)
    start -= start % 128
    best_odd = None
    for t in range(start, 127, -128):
        if N % t == 0:
            if (N // t) % 2 == 0:
                return t
            if best_odd is None:
                best_odd = t
    return best_odd if best_odd is not None else N


def net_forward_pallas_t(x_t, params, *, tile_m=None, use_bf16=False):
    """Primary entry point (no wrapper-side relayout).

    x_t: (2, N) float32 — row 0 = x, row 1 = t, batch on the lane axis.
    Returns (N,) float32.  use_bf16=True enables the bf16 activation/tanh path
    (intended for v6e / v7x; validate PINN accuracy before adopting)."""
    assert x_t.shape[0] == 2
    N = x_t.shape[1]
    NN = params["w_in"].shape[0]
    if tile_m is None:
        tile_m = _pick_tile_m(N)
    assert N % tile_m == 0, "batch must be divisible by tile_m"
    assert tile_m == N or tile_m % 128 == 0, "tile_m must be lane-aligned"

    act_dtype = jnp.bfloat16 if use_bf16 else jnp.float32
    ws = params["ws"].astype(act_dtype)      # hidden weights follow act dtype

    kernel = functools.partial(_mlp_kernel, num_hidden=NUM_HIDDEN,
                               act_dtype=act_dtype)

    grid = (N // tile_m,)
    in_specs = [
        pl.BlockSpec((2, tile_m), lambda i: (0, i)),               # x_t (2, N)
        pl.BlockSpec((NN, 2), lambda i: (0, 0)),                   # w_in (out,in)
        pl.BlockSpec((NN, 1), lambda i: (0, 0)),                   # b_in
        pl.BlockSpec((NUM_HIDDEN, NN, NN), lambda i: (0, 0, 0)),   # ws stacked
        pl.BlockSpec((NUM_HIDDEN, NN, 1), lambda i: (0, 0, 0)),    # bs stacked
        pl.BlockSpec((NN, 1), lambda i: (0, 0)),                   # w_out column
        pl.BlockSpec(memory_space=pltpu.MemorySpace.SMEM),         # b_out scalar
    ]
    out_specs = pl.BlockSpec((1, tile_m), lambda i: (0, i))        # lane-dense row

    out_row = pl.pallas_call(
        kernel,
        out_shape=jax.ShapeDtypeStruct((1, N), jnp.float32),
        grid_spec=pltpu.PrefetchScalarGridSpec(
            num_scalar_prefetch=0,
            grid=grid,
            in_specs=in_specs,
            out_specs=out_specs,
        ),
        compiler_params=pltpu.CompilerParams(
            dimension_semantics=("parallel",)),
    )(x_t, params["w_in"], params["b_in"], ws, params["bs"],
      params["w_out"], params["b_out"])

    return out_row[0]                        # (N,)


def net_forward_pallas(x, params, *, tile_m=None, use_bf16=False):
    """Compat wrapper matching the PyTorch signature: x (N, 2) -> (N, 1).
    Prefer net_forward_pallas_t in a training loop — the transpose/reshape
    here are separate XLA dispatches comparable in cost to the kernel."""
    out = net_forward_pallas_t(x.T, params, tile_m=tile_m, use_bf16=use_bf16)
    return out.reshape(-1, 1)


def init_params(key, NN):
    """nn.Linear-style U(-1/sqrt(fan_in), 1/sqrt(fan_in)) init.  Hidden layers
    keep PyTorch (out_features, in_features) layout; the output weight is
    stored as an (NN, 1) column (transposed nn.Linear weight) for the in-kernel
    VPU multiply + sublane-sum."""
    def linear(k, fan_in, fan_out):
        kw, kb = jax.random.split(k)
        bound = 1.0 / np.sqrt(fan_in)
        w = jax.random.uniform(kw, (fan_out, fan_in), jnp.float32, -bound, bound)
        b = jax.random.uniform(kb, (fan_out, 1), jnp.float32, -bound, bound)
        return w, b

    keys = jax.random.split(key, 2 + NUM_HIDDEN)
    w_in, b_in = linear(keys[0], 2, NN)
    ws, bs = [], []
    for i in range(NUM_HIDDEN):
        w, b = linear(keys[1 + i], NN, NN)
        ws.append(w)
        bs.append(b)
    w_out_pt, b_out = linear(keys[-1], NN, 1)          # (1, NN), (1, 1)
    return {
        "w_in": w_in, "b_in": b_in,                    # (NN, 2), (NN, 1)
        "ws": jnp.stack(ws, axis=0),                   # (8, NN, NN)
        "bs": jnp.stack(bs, axis=0),                   # (8, NN, 1)
        "w_out": w_out_pt.T, "b_out": b_out,           # (NN, 1), (1, 1)
    }


def net_forward_ref_t(x_t, params):
    """Pure-JAX reference of the PyTorch forward pass, same math order as the
    kernel (explicit input-layer FMAs, guarded power).  x_t: (2, N) -> (N,)."""
    x0 = x_t[0]                                        # (N,)
    x1 = x_t[1]                                        # (N,)
    w_in = params["w_in"]                              # (NN, 2)
    z = (w_in[:, 0:1] * x0[None, :]
         + w_in[:, 1:2] * x1[None, :]
         + params["b_in"])                             # (NN, N)
    out = z * jnp.tanh(z)
    for i in range(NUM_HIDDEN):
        z = params["ws"][i] @ out + params["bs"][i]
        out = z * jnp.tanh(z)
    out_nn = jnp.sum(params["w_out"] * out, axis=0) + params["b_out"][0, 0]
    x0_safe = jnp.maximum(x0, jnp.float32(1e-30))
    x0_pow = jnp.where(x0 > 0.0, jnp.exp(ALPHA * jnp.log(x0_safe)), 0.0)
    xs = x0_pow * (x1 * (1.0 - x1))
    return xs * out_nn                                 # (N,)


if __name__ == "__main__":
    NN = 32          # hidden width
    N = 256          # batch of (x, t) collocation points

    key = jax.random.PRNGKey(0)
    k_params, k_x = jax.random.split(key)

    params = init_params(k_params, NN)

    # PDE collocation points, carried in the kernel-native (2, N) layout.
    x_t = jax.random.uniform(k_x, (2, N), jnp.float32, minval=0.01, maxval=1.0)
    # Include boundary points (x = 0, t = 0, t = 1) to exercise the x**alpha
    # guard and the t*(1-t) zeros.
    x_t = x_t.at[0, 0].set(0.0)
    x_t = x_t.at[1, 1].set(0.0)
    x_t = x_t.at[1, 2].set(1.0)

    # ---- f32 path (all generations), _pick_tile_m -> tile_m=128, grid=(2,) --
    out = net_forward_pallas_t(x_t, params)
    out = jax.block_until_ready(out)

    ref = net_forward_ref_t(x_t, params)
    np.testing.assert_allclose(np.asarray(out), np.asarray(ref),
                               rtol=1e-4, atol=1e-6)

    # Compat wrapper ((N, 2) in, (N, 1) out) reuses the same compiled kernel.
    out_rows = jax.block_until_ready(net_forward_pallas(x_t.T, params))
    np.testing.assert_allclose(np.asarray(out_rows[:, 0]), np.asarray(ref),
                               rtol=1e-4, atol=1e-6)

    # ---- optional bf16 activation/tanh path (v6e / v7x only) ----------------
    # TODO(synk): validate bf16 accuracy against the f32 PINN residual before
    # enabling it in training; here we only sanity-check it runs and is close.
    kind = jax.devices()[0].device_kind.lower()
    if any(tag in kind for tag in ("v6", "v7", "7x")):
        out_bf16 = jax.block_until_ready(
            net_forward_pallas_t(x_t, params, use_bf16=True))
        np.testing.assert_allclose(np.asarray(out_bf16), np.asarray(out),
                                   rtol=2e-1, atol=5e-3)

    print("KERNEL_OK")
</pallas_src>

<mosaic_0001>
module attributes {stable_mosaic.version = 11 : i64} {
  func.func @_mlp_kernel(%arg0: i32, %arg1: memref<2x128xf32, #tpu.memory_space<vmem>>, %arg2: memref<32x2xf32, #tpu.memory_space<vmem>>, %arg3: memref<32x1xf32, #tpu.memory_space<vmem>>, %arg4: memref<8x32x32xf32, #tpu.memory_space<vmem>>, %arg5: memref<8x32x1xf32, #tpu.memory_space<vmem>>, %arg6: memref<32x1xf32, #tpu.memory_space<vmem>>, %arg7: memref<1x1xf32, #tpu.memory_space<smem>>, %arg8: memref<1x128xf32, #tpu.memory_space<vmem>>) attributes {dimension_semantics = [#tpu.dimension_semantics<parallel>], iteration_bounds = array<i64: 2>, scalar_prefetch = 0 : i64, scratch_operands = 0 : i64, tpu.core_type = #tpu.core_type<tc>, window_params = [{transform_indices = @transform_0, window_bounds = array<i64: 2, 128>}, {pipeline_mode = #tpu.pipeline_mode<synchronous>, transform_indices = @transform_1, window_bounds = array<i64: 32, 2>}, {pipeline_mode = #tpu.pipeline_mode<synchronous>, transform_indices = @transform_2, window_bounds = array<i64: 32, 1>}, {pipeline_mode = #tpu.pipeline_mode<synchronous>, transform_indices = @transform_3, window_bounds = array<i64: 8, 32, 32>}, {pipeline_mode = #tpu.pipeline_mode<synchronous>, transform_indices = @transform_4, window_bounds = array<i64: 8, 32, 1>}, {pipeline_mode = #tpu.pipeline_mode<synchronous>, transform_indices = @transform_5, window_bounds = array<i64: 32, 1>}, {transform_indices = @transform_6, window_bounds = array<i64: 1, 1>}, {transform_indices = @transform_7, window_bounds = array<i64: 1, 128>}]} {
    %c0 = arith.constant 0 : index
    %c0_0 = arith.constant 0 : index
    %0 = vector.load %arg1[%c0, %c0_0] : memref<2x128xf32, #tpu.memory_space<vmem>>, vector<1x128xf32>
    %c1 = arith.constant 1 : index
    %c0_1 = arith.constant 0 : index
    %1 = vector.load %arg1[%c1, %c0_1] : memref<2x128xf32, #tpu.memory_space<vmem>>, vector<1x128xf32>
    %c0_2 = arith.constant 0 : index
    %c0_3 = arith.constant 0 : index
    %2 = vector.load %arg2[%c0_2, %c0_3] : memref<32x2xf32, #tpu.memory_space<vmem>>, vector<32x2xf32>
    %3 = vector.extract_strided_slice %2 {offsets = [0, 0], sizes = [32, 1], strides = [1, 1]} : vector<32x2xf32> to vector<32x1xf32>
    %4 = vector.broadcast %3 : vector<32x1xf32> to vector<32x128xf32>
    %5 = vector.broadcast %0 : vector<1x128xf32> to vector<32x128xf32>
    %6 = arith.mulf %4, %5 : vector<32x128xf32>
    %7 = vector.extract_strided_slice %2 {offsets = [0, 1], sizes = [32, 1], strides = [1, 1]} : vector<32x2xf32> to vector<32x1xf32>
    %8 = vector.broadcast %7 : vector<32x1xf32> to vector<32x128xf32>
    %9 = vector.broadcast %1 : vector<1x128xf32> to vector<32x128xf32>
    %10 = arith.mulf %8, %9 : vector<32x128xf32>
    %11 = arith.addf %6, %10 : vector<32x128xf32>
    %c0_4 = arith.constant 0 : index
    %c0_5 = arith.constant 0 : index
    %12 = vector.load %arg3[%c0_4, %c0_5] : memref<32x1xf32, #tpu.memory_space<vmem>>, vector<32x1xf32>
    %13 = vector.broadcast %12 : vector<32x1xf32> to vector<32x128xf32>
    %14 = arith.addf %11, %13 : vector<32x128xf32>
    %15 = math.tanh %14 : vector<32x128xf32>
    %16 = arith.mulf %14, %15 : vector<32x128xf32>
    %c0_6 = arith.constant 0 : index
    %c0_7 = arith.constant 0 : index
    %c0_8 = arith.constant 0 : index
    %17 = vector.load %arg4[%c0_6, %c0_7, %c0_8] : memref<8x32x32xf32, #tpu.memory_space<vmem>>, vector<1x32x32xf32>
    %18 = vector.shape_cast %17 : vector<1x32x32xf32> to vector<32x32xf32>
    %cst = arith.constant dense<0.000000e+00> : vector<32x128xf32>
    %19 = tpu.matmul %18, %16, %cst {dimension_numbers = #tpu.dot_dimension_numbers<[1], [0], [0], [1], [0, 0, 1, 1], [], []>} : vector<32x32xf32>, vector<32x128xf32>, vector<32x128xf32> -> vector<32x128xf32>
    %c0_9 = arith.constant 0 : index
    %c0_10 = arith.constant 0 : index
    %c0_11 = arith.constant 0 : index
    %20 = vector.load %arg5[%c0_9, %c0_10, %c0_11] : memref<8x32x1xf32, #tpu.memory_space<vmem>>, vector<1x32x1xf32>
    %21 = vector.shape_cast %20 : vector<1x32x1xf32> to vector<32x1xf32>
    %22 = vector.broadcast %21 : vector<32x1xf32> to vector<32x128xf32>
    %23 = arith.addf %19, %22 : vector<32x128xf32>
    %24 = math.tanh %23 : vector<32x128xf32>
    %25 = arith.mulf %23, %24 : vector<32x128xf32>
    %c1_12 = arith.constant 1 : index
    %c0_13 = arith.constant 0 : index
    %c0_14 = arith.constant 0 : index
    %26 = vector.load %arg4[%c1_12, %c0_13, %c0_14] : memref<8x32x32xf32, #tpu.memory_space<vmem>>, vector<1x32x32xf32>
    %27 = vector.shape_cast %26 : vector<1x32x32xf32> to vector<32x32xf32>
    %cst_15 = arith.constant dense<0.000000e+00> : vector<32x128xf32>
    %28 = tpu.matmul %27, %25, %cst_15 {dimension_numbers = #tpu.dot_dimension_numbers<[1], [0], [0], [1], [0, 0, 1, 1], [], []>} : vector<32x32xf32>, vector<32x128xf32>, vector<32x128xf32> -> vector<32x128xf32>
    %c1_16 = arith.constant 1 : index
    %c0_17 = arith.constant 0 : index
    %c0_18 = arith.constant 0 : index
    %29 = vector.load %arg5[%c1_16, %c0_17, %c0_18] : memref<8x32x1xf32, #tpu.memory_space<vmem>>, vector<1x32x1xf32>
    %30 = vector.shape_cast %29 : vector<1x32x1xf32> to vector<32x1xf32>
    %31 = vector.broadcast %30 : vector<32x1xf32> to vector<32x128xf32>
    %32 = arith.addf %28, %31 : vector<32x128xf32>
    %33 = math.tanh %32 : vector<32x128xf32>
    %34 = arith.mulf %32, %33 : vector<32x128xf32>
    %c2 = arith.constant 2 : index
    %c0_19 = arith.constant 0 : index
    %c0_20 = arith.constant 0 : index
    %35 = vector.load %arg4[%c2, %c0_19, %c0_20] : memref<8x32x32xf32, #tpu.memory_space<vmem>>, vector<1x32x32xf32>
    %36 = vector.shape_cast %35 : vector<1x32x32xf32> to vector<32x32xf32>
    %cst_21 = arith.constant dense<0.000000e+00> : vector<32x128xf32>
    %37 = tpu.matmul %36, %34, %cst_21 {dimension_numbers = #tpu.dot_dimension_numbers<[1], [0], [0], [1], [0, 0, 1, 1], [], []>} : vector<32x32xf32>, vector<32x128xf32>, vector<32x128xf32> -> vector<32x128xf32>
    %c2_22 = arith.constant 2 : index
    %c0_23 = arith.constant 0 : index
    %c0_24 = arith.constant 0 : index
    %38 = vector.load %arg5[%c2_22, %c0_23, %c0_24] : memref<8x32x1xf32, #tpu.memory_space<vmem>>, vector<1x32x1xf32>
    %39 = vector.shape_cast %38 : vector<1x32x1xf32> to vector<32x1xf32>
    %40 = vector.broadcast %39 : vector<32x1xf32> to vector<32x128xf32>
    %41 = arith.addf %37, %40 : vector<32x128xf32>
    %42 = math.tanh %41 : vector<32x128xf32>
    %43 = arith.mulf %41, %42 : vector<32x128xf32>
    %c3 = arith.constant 3 : index
    %c0_25 = arith.constant 0 : index
    %c0_26 = arith.constant 0 : index
    %44 = vector.load %arg4[%c3, %c0_25, %c0_26] : memref<8x32x32xf32, #tpu.memory_space<vmem>>, vector<1x32x32xf32>
    %45 = vector.shape_cast %44 : vector<1x32x32xf32> to vector<32x32xf32>
    %cst_27 = arith.constant dense<0.000000e+00> : vector<32x128xf32>
    %46 = tpu.matmul %45, %43, %cst_27 {dimension_numbers = #tpu.dot_dimension_numbers<[1], [0], [0], [1], [0, 0, 1, 1], [], []>} : vector<32x32xf32>, vector<32x128xf32>, vector<32x128xf32> -> vector<32x128xf32>
    %c3_28 = arith.constant 3 : index
    %c0_29 = arith.constant 0 : index
    %c0_30 = arith.constant 0 : index
    %47 = vector.load %arg5[%c3_28, %c0_29, %c0_30] : memref<8x32x1xf32, #tpu.memory_space<vmem>>, vector<1x32x1xf32>
    %48 = vector.shape_cast %47 : vector<1x32x1xf32> to vector<32x1xf32>
    %49 = vector.broadcast %48 : vector<32x1xf32> to vector<32x128xf32>
    %50 = arith.addf %46, %49 : vector<32x128xf32>
    %51 = math.tanh %50 : vector<32x128xf32>
    %52 = arith.mulf %50, %51 : vector<32x128xf32>
    %c4 = arith.constant 4 : index
    %c0_31 = arith.constant 0 : index
    %c0_32 = arith.constant 0 : index
    %53 = vector.load %arg4[%c4, %c0_31, %c0_32] : memref<8x32x32xf32, #tpu.memory_space<vmem>>, vector<1x32x32xf32>
    %54 = vector.shape_cast %53 : vector<1x32x32xf32> to vector<32x32xf32>
    %cst_33 = arith.constant dense<0.000000e+00> : vector<32x128xf32>
    %55 = tpu.matmul %54, %52, %cst_33 {dimension_numbers = #tpu.dot_dimension_numbers<[1], [0], [0], [1], [0, 0, 1, 1], [], []>} : vector<32x32xf32>, vector<32x128xf32>, vector<32x128xf32> -> vector<32x128xf32>
    %c4_34 = arith.constant 4 : index
    %c0_35 = arith.constant 0 : index
    %c0_36 = arith.constant 0 : index
    %56 = vector.load %arg5[%c4_34, %c0_35, %c0_36] : memref<8x32x1xf32, #tpu.memory_space<vmem>>, vector<1x32x1xf32>
    %57 = vector.shape_cast %56 : vector<1x32x1xf32> to vector<32x1xf32>
    %58 = vector.broadcast %57 : vector<32x1xf32> to vector<32x128xf32>
    %59 = arith.addf %55, %58 : vector<32x128xf32>
    %60 = math.tanh %59 : vector<32x128xf32>
    %61 = arith.mulf %59, %60 : vector<32x128xf32>
    %c5 = arith.constant 5 : index
    %c0_37 = arith.constant 0 : index
    %c0_38 = arith.constant 0 : index
    %62 = vector.load %arg4[%c5, %c0_37, %c0_38] : memref<8x32x32xf32, #tpu.memory_space<vmem>>, vector<1x32x32xf32>
    %63 = vector.shape_cast %62 : vector<1x32x32xf32> to vector<32x32xf32>
    %cst_39 = arith.constant dense<0.000000e+00> : vector<32x128xf32>
    %64 = tpu.matmul %63, %61, %cst_39 {dimension_numbers = #tpu.dot_dimension_numbers<[1], [0], [0], [1], [0, 0, 1, 1], [], []>} : vector<32x32xf32>, vector<32x128xf32>, vector<32x128xf32> -> vector<32x128xf32>
    %c5_40 = arith.constant 5 : index
    %c0_41 = arith.constant 0 : index
    %c0_42 = arith.constant 0 : index
    %65 = vector.load %arg5[%c5_40, %c0_41, %c0_42] : memref<8x32x1xf32, #tpu.memory_space<vmem>>, vector<1x32x1xf32>
    %66 = vector.shape_cast %65 : vector<1x32x1xf32> to vector<32x1xf32>
    %67 = vector.broadcast %66 : vector<32x1xf32> to vector<32x128xf32>
    %68 = arith.addf %64, %67 : vector<32x128xf32>
    %69 = math.tanh %68 : vector<32x128xf32>
    %70 = arith.mulf %68, %69 : vector<32x128xf32>
    %c6 = arith.constant 6 : index
    %c0_43 = arith.constant 0 : index
    %c0_44 = arith.constant 0 : index
    %71 = vector.load %arg4[%c6, %c0_43, %c0_44] : memref<8x32x32xf32, #tpu.memory_space<vmem>>, vector<1x32x32xf32>
    %72 = vector.shape_cast %71 : vector<1x32x32xf32> to vector<32x32xf32>
    %cst_45 = arith.constant dense<0.000000e+00> : vector<32x128xf32>
    %73 = tpu.matmul %72, %70, %cst_45 {dimension_numbers = #tpu.dot_dimension_numbers<[1], [0], [0], [1], [0, 0, 1, 1], [], []>} : vector<32x32xf32>, vector<32x128xf32>, vector<32x128xf32> -> vector<32x128xf32>
    %c6_46 = arith.constant 6 : index
    %c0_47 = arith.constant 0 : index
    %c0_48 = arith.constant 0 : index
    %74 = vector.load %arg5[%c6_46, %c0_47, %c0_48] : memref<8x32x1xf32, #tpu.memory_space<vmem>>, vector<1x32x1xf32>
    %75 = vector.shape_cast %74 : vector<1x32x1xf32> to vector<32x1xf32>
    %76 = vector.broadcast %75 : vector<32x1xf32> to vector<32x128xf32>
    %77 = arith.addf %73, %76 : vector<32x128xf32>
    %78 = math.tanh %77 : vector<32x128xf32>
    %79 = arith.mulf %77, %78 : vector<32x128xf32>
    %c7 = arith.constant 7 : index
    %c0_49 = arith.constant 0 : index
    %c0_50 = arith.constant 0 : index
    %80 = vector.load %arg4[%c7, %c0_49, %c0_50] : memref<8x32x32xf32, #tpu.memory_space<vmem>>, vector<1x32x32xf32>
    %81 = vector.shape_cast %80 : vector<1x32x32xf32> to vector<32x32xf32>
    %cst_51 = arith.constant dense<0.000000e+00> : vector<32x128xf32>
    %82 = tpu.matmul %81, %79, %cst_51 {dimension_numbers = #tpu.dot_dimension_numbers<[1], [0], [0], [1], [0, 0, 1, 1], [], []>} : vector<32x32xf32>, vector<32x128xf32>, vector<32x128xf32> -> vector<32x128xf32>
    %c7_52 = arith.constant 7 : index
    %c0_53 = arith.constant 0 : index
    %c0_54 = arith.constant 0 : index
    %83 = vector.load %arg5[%c7_52, %c0_53, %c0_54] : memref<8x32x1xf32, #tpu.memory_space<vmem>>, vector<1x32x1xf32>
    %84 = vector.shape_cast %83 : vector<1x32x1xf32> to vector<32x1xf32>
    %85 = vector.broadcast %84 : vector<32x1xf32> to vector<32x128xf32>
    %86 = arith.addf %82, %85 : vector<32x128xf32>
    %87 = math.tanh %86 : vector<32x128xf32>
    %88 = arith.mulf %86, %87 : vector<32x128xf32>
    %c0_55 = arith.constant 0 : index
    %c0_56 = arith.constant 0 : index
    %89 = vector.load %arg6[%c0_55, %c0_56] : memref<32x1xf32, #tpu.memory_space<vmem>>, vector<32x1xf32>
    %90 = vector.broadcast %89 : vector<32x1xf32> to vector<32x128xf32>
    %91 = arith.mulf %90, %88 : vector<32x128xf32>
    %cst_57 = arith.constant dense<0.000000e+00> : vector<128xf32>
    %92 = vector.multi_reduction <add>, %91, %cst_57 [0] : vector<32x128xf32> to vector<128xf32>
    %93 = vector.shape_cast %92 : vector<128xf32> to vector<1x128xf32>
    %c0_58 = arith.constant 0 : index
    %c0_59 = arith.constant 0 : index
    %94 = memref.load %arg7[%c0_58, %c0_59] : memref<1x1xf32, #tpu.memory_space<smem>>
    %95 = vector.broadcast %94 : f32 to vector<1x128xf32>
    %96 = arith.addf %93, %95 : vector<1x128xf32>
    %cst_60 = arith.constant 1.000000e-30 : f32
    %97 = vector.broadcast %cst_60 : f32 to vector<1x128xf32>
    %98 = arith.maximumf %0, %97 : vector<1x128xf32>
    %cst_61 = arith.constant 0.000000e+00 : f32
    %99 = vector.broadcast %cst_61 : f32 to vector<1x128xf32>
    %100 = arith.cmpf ogt, %0, %99 : vector<1x128xf32>
    %101 = math.log %98 : vector<1x128xf32>
    %cst_62 = arith.constant 0.899999976 : f32
    %102 = vector.broadcast %cst_62 : f32 to vector<1x128xf32>
    %103 = arith.mulf %102, %101 : vector<1x128xf32>
    %104 = math.exp %103 : vector<1x128xf32>
    %cst_63 = arith.constant 0.000000e+00 : f32
    %105 = vector.broadcast %cst_63 : f32 to vector<1x128xf32>
    %106 = arith.select %100, %104, %105 : vector<1x128xi1>, vector<1x128xf32>
    %cst_64 = arith.constant 1.000000e+00 : f32
    %107 = vector.broadcast %cst_64 : f32 to vector<1x128xf32>
    %108 = arith.subf %107, %1 : vector<1x128xf32>
    %109 = arith.mulf %1, %108 : vector<1x128xf32>
    %110 = arith.mulf %106, %109 : vector<1x128xf32>
    %111 = arith.mulf %110, %96 : vector<1x128xf32>
    %c0_65 = arith.constant 0 : index
    %c0_66 = arith.constant 0 : index
    %112 = vector.load %arg8[%c0_65, %c0_66] : memref<1x128xf32, #tpu.memory_space<vmem>>, vector<1x128xf32>
    tpu.vector_store %arg8[%c0_65, %c0_66], %111 {strides = array<i32>} : memref<1x128xf32, #tpu.memory_space<vmem>>, vector<1x128xf32>,
    return
  }
  func.func @transform_0(%arg0: i32) -> (i32, i32) {
    %c0_i32 = arith.constant 0 : i32
    %c0_i32_0 = arith.constant 0 : i32
    return %c0_i32, %arg0 : i32, i32
  }
  func.func @transform_1(%arg0: i32) -> (i32, i32) {
    %c0_i32 = arith.constant 0 : i32
    %c0_i32_0 = arith.constant 0 : i32
    %c0_i32_1 = arith.constant 0 : i32
    return %c0_i32, %c0_i32_0 : i32, i32
  }
  func.func @transform_2(%arg0: i32) -> (i32, i32) {
    %c0_i32 = arith.constant 0 : i32
    %c0_i32_0 = arith.constant 0 : i32
    %c0_i32_1 = arith.constant 0 : i32
    return %c0_i32, %c0_i32_0 : i32, i32
  }
  func.func @transform_3(%arg0: i32) -> (i32, i32, i32) {
    %c0_i32 = arith.constant 0 : i32
    %c0_i32_0 = arith.constant 0 : i32
    %c0_i32_1 = arith.constant 0 : i32
    %c0_i32_2 = arith.constant 0 : i32
    return %c0_i32, %c0_i32_0, %c0_i32_1 : i32, i32, i32
  }
  func.func @transform_4(%arg0: i32) -> (i32, i32, i32) {
    %c0_i32 = arith.constant 0 : i32
    %c0_i32_0 = arith.constant 0 : i32
    %c0_i32_1 = arith.constant 0 : i32
    %c0_i32_2 = arith.constant 0 : i32
    return %c0_i32, %c0_i32_0, %c0_i32_1 : i32, i32, i32
  }
  func.func @transform_5(%arg0: i32) -> (i32, i32) {
    %c0_i32 = arith.constant 0 : i32
    %c0_i32_0 = arith.constant 0 : i32
    %c0_i32_1 = arith.constant 0 : i32
    return %c0_i32, %c0_i32_0 : i32, i32
  }
  func.func @transform_6(%arg0: i32) -> (i32, i32) {
    %c0_i32 = arith.constant 0 : i32
    %c0_i32_0 = arith.constant 0 : i32
    %c0_i32_1 = arith.constant 0 : i32
    return %c0_i32, %c0_i32_0 : i32, i32
  }
  func.func @transform_7(%arg0: i32) -> (i32, i32) {
    %c0_i32 = arith.constant 0 : i32
    %c0_i32_0 = arith.constant 0 : i32
    return %c0_i32, %arg0 : i32, i32
  }
}

</mosaic_0001>

<llo_original>
// kernel: tpu_custom_call.1
$region0: #{tpu_custom_call.1}
  #allocation0 [shape = 'u32[]', space=smem, size = 0x4, offset = 0x4, fixed_abs, tag = 'smem constant byte address 0x4 - core index']
  #allocation1 [shape = 'u32[72,128]{1,0:T(1,128)}', space=vmem, size = 0x9000, scoped, tag = 'internal scratch']
  #allocation2 [shape = 'f32[1,1]{1,0:T(1,128)S(6)}', space=smem, size = 0x200, scoped, tag = 'scoped memory for tpu_custom_call.1']
  %s0 = inlined_call_operand.vmem [shape: f32[2,256], index: 0, kind: input, shape index: {}]
  %s1 = inlined_call_operand.vmem [shape: f32[32,2], index: 1, kind: input, shape index: {}]
  %s2 = inlined_call_operand.vmem [shape: f32[32,1], index: 2, kind: input, shape index: {}]
  %s3 = inlined_call_operand.vmem [shape: f32[8,32,32], index: 3, kind: input, shape index: {}]
  %s4 = inlined_call_operand.vmem [shape: f32[8,32,1], index: 4, kind: input, shape index: {}]
  %s5 = inlined_call_operand.vmem [shape: f32[32,1], index: 5, kind: input, shape index: {}]
  %s6 = inlined_call_operand.<no memory space> [shape: f32[1,1], index: 6, kind: input, shape index: {}]
  %s7 = inlined_call_operand.hbm [shape: f32[1,256], index: 7, kind: output, shape index: {}]
  %s8 = sld [smem:[#allocation0]]
  $region61: #{tpu_custom_call.1} parent=0
    _
  %s10 = ssub.s32 1, %s8
  %s11 = scalar_select 0, %s10, %s8
  %12 = sst [smem:[#allocation2]] %s6
  $region1: #{tpu_custom_call.1} parent=0
    #allocation3 [shape = 'u8[1024]{0}', space=vmem, size = 0x400, scoped, tag = 'output window, operand 0']
    #allocation4 [shape = 's32[2]{0}', space=sflag, size = 0x8, scoped, tag = 'scoped memory for tpu_custom_call.1']
    %13 = vsyncpa [#allocation4], 0
    %s14 = scalar_lea.sflag [#allocation4], 1
    %15 = vsyncpa %s14, 0
    loop: start=0, step=1, limit=4
    $region2: #{tpu_custom_call.1} parent=1 // loop_pre_header
      _
    $region3: #{tpu_custom_call.1} parent=1 // loop_header
      %s17 = sphi 0, %s21
      %p18 = scmp.ge.s32.totalorder %s17, 4
      %s27 = sphi 0, %s29
      %s30 = sphi 0, %s27
      %s31 = sphi 0, %s30
      %s47 = sphi 0, %s31
      %s51 = sphi 0, %s51
      %s53 = sphi 0, %s51
      %s54 = sphi 0, %s53
      %s68 = sphi 0, %s54
      %s72 = sphi 0, %s72
      %s74 = sphi 0, %s72
      %s75 = sphi 0, %s74
      %s89 = sphi 0, %s75
      %s93 = sphi 0, %s93
      %s95 = sphi 0, %s93
      %s96 = sphi 0, %s95
      %s110 = sphi 0, %s96
      %s114 = sphi 0, %s114
      %s116 = sphi 0, %s114
      %s117 = sphi 0, %s116
      %s131 = sphi 0, %s117
      %s135 = sphi 0, %s135
      %s137 = sphi 0, %s135
      %s138 = sphi 0, %s137
      %s152 = sphi 0, %s138
      %s156 = sphi 0, %s156
      %s158 = sphi 0, %s156
      %s159 = sphi 0, %s158
      %s173 = sphi 0, %s159
      %s179 = sphi 0, %s181
      %s182 = sphi 0, %s179
      %s183 = sphi 0, %s182
      %s199 = sphi 0, %s183
    $region4: #{tpu_custom_call.1} parent=1 // loop_header_branch
      %20 = sbr.rel (%p18) target = $region8
    $region5: #{tpu_custom_call.1} parent=1 // loop_body
      %s22 = ssub.s32 %s17, 1
      %s23 = ssub.s32 %s17, 2
      %s24 = sadd.s32 %s17, 1
      %s25 = ssub.s32 %s17, %s24
      %p26 = scmp.eq.s32.totalorder %s25, 0
      %s28 = sadd.s32 %s27, 1
      %s29 = scalar_select %p26, %s27, %s28
      %p32 = pneg %p26
      %p33 = scmp.eq.s32.totalorder %s17, 1
      %p34 = por %p32, %p33
      %p35 = scmp.ne.s32.totalorder %s27, %s30
      %p36 = scmp.eq.s32.totalorder %s17, 0
      %p37 = por %p35, %p36
      %p38 = scmp.ne.s32.totalorder %s27, %s30
      %p39 = scmp.eq.s32.totalorder %s22, 1
      %p40 = por %p38, %p39
      %p41 = scmp.ne.s32.totalorder %s30, %s31
      %p42 = scmp.eq.s32.totalorder %s22, 0
      %p43 = por %p41, %p42
      %p44 = scmp.ne.s32.totalorder %s30, %s31
      %p45 = scmp.eq.s32.totalorder %s23, 1
      %p46 = por %p44, %p45
      %p48 = scmp.ne.s32.totalorder %s31, %s47
      %p49 = scmp.eq.s32.totalorder %s23, 0
      %p50 = por %p48, %p49
      %s52 = sadd.s32 %s51, 1
      %p55 = scmp.eq.s32.totalorder %s17, 1
      %p56 = scmp.ne.s32.totalorder %s51, %s53
      %p57 = scmp.eq.s32.totalorder %s17, 0
      %p58 = por %p56, %p57
      %p59 = scmp.ne.s32.totalorder %s51, %s53
      %p60 = scmp.eq.s32.totalorder %s22, 1
      %p61 = por %p59, %p60
      %p62 = scmp.ne.s32.totalorder %s53, %s54
      %p63 = scmp.eq.s32.totalorder %s22, 0
      %p64 = por %p62, %p63
      %p65 = scmp.ne.s32.totalorder %s53, %s54
      %p66 = scmp.eq.s32.totalorder %s23, 1
      %p67 = por %p65, %p66
      %p69 = scmp.ne.s32.totalorder %s54, %s68
      %p70 = scmp.eq.s32.totalorder %s23, 0
      %p71 = por %p69, %p70
      %s73 = sadd.s32 %s72, 1
      %p76 = scmp.eq.s32.totalorder %s17, 1
      %p77 = scmp.ne.s32.totalorder %s72, %s74
      %p78 = scmp.eq.s32.totalorder %s17, 0
      %p79 = por %p77, %p78
      %p80 = scmp.ne.s32.totalorder %s72, %s74
      %p81 = scmp.eq.s32.totalorder %s22, 1
      %p82 = por %p80, %p81
      %p83 = scmp.ne.s32.totalorder %s74, %s75
      %p84 = scmp.eq.s32.totalorder %s22, 0
      %p85 = por %p83, %p84
      %p86 = scmp.ne.s32.totalorder %s74, %s75
      %p87 = scmp.eq.s32.totalorder %s23, 1
      %p88 = por %p86, %p87
      %p90 = scmp.ne.s32.totalorder %s75, %s89
      %p91 = scmp.eq.s32.totalorder %s23, 0
      %p92 = por %p90, %p91
      %s94 = sadd.s32 %s93, 1
      %p97 = scmp.eq.s32.totalorder %s17, 1
      %p98 = scmp.ne.s32.totalorder %s93, %s95
      %p99 = scmp.eq.s32.totalorder %s17, 0
      %p100 = por %p98, %p99
      %p101 = scmp.ne.s32.totalorder %s93, %s95
      %p102 = scmp.eq.s32.totalorder %s22, 1
      %p103 = por %p101, %p102
      %p104 = scmp.ne.s32.totalorder %s95, %s96
      %p105 = scmp.eq.s32.totalorder %s22, 0
      %p106 = por %p104, %p105
      %p107 = scmp.ne.s32.totalorder %s95, %s96
      %p108 = scmp.eq.s32.totalorder %s23, 1
      %p109 = por %p107, %p108
      %p111 = scmp.ne.s32.totalorder %s96, %s110
      %p112 = scmp.eq.s32.totalorder %s23, 0
      %p113 = por %p111, %p112
      %s115 = sadd.s32 %s114, 1
      %p118 = scmp.eq.s32.totalorder %s17, 1
      %p119 = scmp.ne.s32.totalorder %s114, %s116
      %p120 = scmp.eq.s32.totalorder %s17, 0
      %p121 = por %p119, %p120
      %p122 = scmp.ne.s32.totalorder %s114, %s116
      %p123 = scmp.eq.s32.totalorder %s22, 1
      %p124 = por %p122, %p123
      %p125 = scmp.ne.s32.totalorder %s116, %s117
      %p126 = scmp.eq.s32.totalorder %s22, 0
      %p127 = por %p125, %p126
      %p128 = scmp.ne.s32.totalorder %s116, %s117
      %p129 = scmp.eq.s32.totalorder %s23, 1
      %p130 = por %p128, %p129
      %p132 = scmp.ne.s32.totalorder %s117, %s131
      %p133 = scmp.eq.s32.totalorder %s23, 0
      %p134 = por %p132, %p133
      %s136 = sadd.s32 %s135, 1
      %p139 = scmp.eq.s32.totalorder %s17, 1
      %p140 = scmp.ne.s32.totalorder %s135, %s137
      %p141 = scmp.eq.s32.totalorder %s17, 0
      %p142 = por %p140, %p141
      %p143 = scmp.ne.s32.totalorder %s135, %s137
      %p144 = scmp.eq.s32.totalorder %s22, 1
      %p145 = por %p143, %p144
      %p146 = scmp.ne.s32.totalorder %s137, %s138
      %p147 = scmp.eq.s32.totalorder %s22, 0
      %p148 = por %p146, %p147
      %p149 = scmp.ne.s32.totalorder %s137, %s138
      %p150 = scmp.eq.s32.totalorder %s23, 1
      %p151 = por %p149, %p150
      %p153 = scmp.ne.s32.totalorder %s138, %s152
      %p154 = scmp.eq.s32.totalorder %s23, 0
      %p155 = por %p153, %p154
      %s157 = sadd.s32 %s156, 1
      %p160 = scmp.eq.s32.totalorder %s17, 1
      %p161 = scmp.ne.s32.totalorder %s156, %s158
      %p162 = scmp.eq.s32.totalorder %s17, 0
      %p163 = por %p161, %p162
      %p164 = scmp.ne.s32.totalorder %s156, %s158
      %p165 = scmp.eq.s32.totalorder %s22, 1
      %p166 = por %p164, %p165
      %p167 = scmp.ne.s32.totalorder %s158, %s159
      %p168 = scmp.eq.s32.totalorder %s22, 0
      %p169 = por %p167, %p168
      %p170 = scmp.ne.s32.totalorder %s158, %s159
      %p171 = scmp.eq.s32.totalorder %s23, 1
      %p172 = por %p170, %p171
      %p174 = scmp.ne.s32.totalorder %s159, %s173
      %p175 = scmp.eq.s32.totalorder %s23, 0
      %p176 = por %p174, %p175
      %s177 = ssub.s32 %s17, %s24
      %p178 = scmp.eq.s32.totalorder %s177, 0
      %s180 = sadd.s32 %s179, 1
      %s181 = scalar_select %p178, %s179, %s180
      %p184 = pneg %p178
      %p185 = scmp.eq.s32.totalorder %s17, 1
      %p186 = por %p184, %p185
      %p187 = scmp.ne.s32.totalorder %s179, %s182
      %p188 = scmp.eq.s32.totalorder %s17, 0
      %p189 = por %p187, %p188
      %p190 = scmp.ne.s32.totalorder %s179, %s182
      %p191 = scmp.eq.s32.totalorder %s22, 1
      %p192 = por %p190, %p191
      %p193 = scmp.ne.s32.totalorder %s182, %s183
      %p194 = scmp.eq.s32.totalorder %s22, 0
      %p195 = por %p193, %p194
      %p196 = scmp.ne.s32.totalorder %s182, %s183
      %p197 = scmp.eq.s32.totalorder %s23, 1
      %p198 = por %p196, %p197
      %p200 = scmp.ne.s32.totalorder %s183, %s199
      %p201 = scmp.eq.s32.totalorder %s23, 0
      %p202 = por %p200, %p201
      %p203 = scmp.le.s32.totalorder 1, %s17
      %p204 = scmp.lt.s32.totalorder %s17, 3
      %p205 = pnand %p203, %p204
      %p206 = pneg %p205
      // Predicated region
      $region9: #{tpu_custom_call.1} parent=5 // pred_check
        _
      $region10: #{tpu_custom_call.1} parent=5 // pred_check_branch
        %208 = sbr.rel (%p205) target = $region12
      $region11: #{tpu_custom_call.1} parent=5 // pred_region
        %s209 = ssub.s32 %s17, 1
        // Predicated region
        $region13: #{tpu_custom_call.1} parent=11 // pred_check
          %p210 = pneg %p64
        $region14: #{tpu_custom_call.1} parent=11 // pred_check_branch
          %212 = sbr.rel (%p210) target = $region16
        $region15: #{tpu_custom_call.1} parent=11 // pred_region
          _
        $region16: #{tpu_custom_call.1} parent=11 // pred_fallthru
          _
        // Predicated region
        $region17: #{tpu_custom_call.1} parent=11 // pred_check
          %p213 = pneg %p85
        $region18: #{tpu_custom_call.1} parent=11 // pred_check_branch
          %215 = sbr.rel (%p213) target = $region20
        $region19: #{tpu_custom_call.1} parent=11 // pred_region
          _
        $region20: #{tpu_custom_call.1} parent=11 // pred_fallthru
          _
        // Predicated region
        $region21: #{tpu_custom_call.1} parent=11 // pred_check
          %p216 = pneg %p106
        $region22: #{tpu_custom_call.1} parent=11 // pred_check_branch
          %218 = sbr.rel (%p216) target = $region24
        $region23: #{tpu_custom_call.1} parent=11 // pred_region
          _
        $region24: #{tpu_custom_call.1} parent=11 // pred_fallthru
          _
        // Predicated region
        $region25: #{tpu_custom_call.1} parent=11 // pred_check
          %p219 = pneg %p127
        $region26: #{tpu_custom_call.1} parent=11 // pred_check_branch
          %221 = sbr.rel (%p219) target = $region28
        $region27: #{tpu_custom_call.1} parent=11 // pred_region
          _
        $region28: #{tpu_custom_call.1} parent=11 // pred_fallthru
          _
        // Predicated region
        $region29: #{tpu_custom_call.1} parent=11 // pred_check
          %p222 = pneg %p148
        $region30: #{tpu_custom_call.1} parent=11 // pred_check_branch
          %224 = sbr.rel (%p222) target = $region32
        $region31: #{tpu_custom_call.1} parent=11 // pred_region
          _
        $region32: #{tpu_custom_call.1} parent=11 // pred_fallthru
          _
        // Predicated region
        $region33: #{tpu_custom_call.1} parent=11 // pred_check
          %p225 = pneg %p169
        $region34: #{tpu_custom_call.1} parent=11 // pred_check_branch
          %227 = sbr.rel (%p225) target = $region36
        $region35: #{tpu_custom_call.1} parent=11 // pred_region
          _
        $region36: #{tpu_custom_call.1} parent=11 // pred_fallthru
          _
      $region12: #{tpu_custom_call.1} parent=5 // pred_fallthru
        _
      %p228 = scmp.lt.s32.totalorder %s17, 2
      // Predicated region
      $region37: #{tpu_custom_call.1} parent=5 // pred_check
        %p229 = pneg %p228
      $region38: #{tpu_custom_call.1} parent=5 // pred_check_branch
        %231 = sbr.rel (%p229) target = $region40
      $region39: #{tpu_custom_call.1} parent=5 // pred_region
        // Predicated region
        $region41: #{tpu_custom_call.1} parent=39 // pred_check
          %p232 = pneg %p37
        $region42: #{tpu_custom_call.1} parent=39 // pred_check_branch
          %234 = sbr.rel (%p232) target = $region44
        $region43: #{tpu_custom_call.1} parent=39 // pred_region
          %p235 = scmp.lt.s32.totalorder %s17, 1
          %s236 = scalar_select %p235, %s17, 1
          %s237 = smul.addr %s236, 2
          %s238 = scalar_lea.vmem %s0, %s237
        $region44: #{tpu_custom_call.1} parent=39 // pred_fallthru
          _
      $region40: #{tpu_custom_call.1} parent=5 // pred_fallthru
        _
      %p239 = scmp.le.s32.totalorder 1, %s17
      %p240 = scmp.lt.s32.totalorder %s17, 3
      %p241 = pnand %p239, %p240
      %p242 = pneg %p241
      // Predicated region
      $region45: #{tpu_custom_call.1} parent=5 // pred_check
        _
      $region46: #{tpu_custom_call.1} parent=5 // pred_check_branch
        %244 = sbr.rel (%p241) target = $region48
      $region47: #{tpu_custom_call.1} parent=5 // pred_region
        %s245 = ssub.s32 %s17, 1
        %p246 = scmp.lt.s32.totalorder %s22, 1
        %s247 = scalar_select %p246, %s22, 1
        %s248 = smul.addr %s247, 2
        %s249 = scalar_lea.vmem %s0, %s248
        %p250 = pneg %p43
        %p251 = pneg %p40
        %p252 = pneg %p64
        %p253 = pneg %p61
        %p254 = pneg %p85
        %p255 = pneg %p82
        %p256 = pneg %p106
        %p257 = pneg %p103
        %p258 = pneg %p127
        %p259 = pneg %p124
        %p260 = pneg %p148
        %p261 = pneg %p145
        %p262 = pneg %p169
        %p263 = pneg %p166
        %p264 = pneg %p195
        %p265 = pneg %p192
        %s266 = sand.u32 %s182, 1
        %s267 = scalar_lea.sflag [#allocation4], %s266
        %s268 = sand.u32 %s182, 1
        %s269 = scalar_lea.vmem [#allocation3], %s268
        %p270 = scmp.lt.s32.totalorder %s22, 1
        %s271 = scalar_select %p270, %s22, 1
        %s272 = smul.addr %s271, 2
        %s273 = scalar_lea.vmem %s0, %s272
        %v274 = vld [vmem:[%s273] sm:$0x1]
        %v275 = vld [vmem:[%s273 + $0x1] sm:$0x1]
        %v276 = vld [vmem:[%s1] sm:$0xff]
        %v277 = vld [vmem:[%s1 + $0x8] sm:$0xff]
        %v278 = vld [vmem:[%s1 + $0x10] sm:$0xff]
        %v279 = vld [vmem:[%s1 + $0x18] sm:$0xff]
        %281 = vset.pattern.permute.xlu0 0
        %282 = vperm.xlu0 %281, %v276
        %v283 = vpop.permute.xlu0 %282
        %286 = vset.pattern.permute.xlu0 0
        %287 = vperm.xlu0 %286, %v277
        %v288 = vpop.permute.xlu0 %287
        %291 = vset.pattern.permute.xlu0 0
        %292 = vperm.xlu0 %291, %v278
        %v293 = vpop.permute.xlu0 %292
        %296 = vset.pattern.permute.xlu0 0
        %297 = vperm.xlu0 %296, %v279
        %v298 = vpop.permute.xlu0 %297
        %v300 = vperm.slane %v274, 0
        %v301 = vmul.f32 %v283, %v300
        %v302 = vmul.f32 %v288, %v300
        %v303 = vmul.f32 %v293, %v300
        %v304 = vmul.f32 %v298, %v300
        %305 = vset.pattern.permute.xlu0 1
        %306 = vperm.xlu0 %305, %v276
        %v307 = vpop.permute.xlu0 %306
        %309 = vset.pattern.permute.xlu0 1
        %310 = vperm.xlu0 %309, %v277
        %v311 = vpop.permute.xlu0 %310
        %313 = vset.pattern.permute.xlu0 1
        %314 = vperm.xlu0 %313, %v278
        %v315 = vpop.permute.xlu0 %314
        %317 = vset.pattern.permute.xlu0 1
        %318 = vperm.xlu0 %317, %v279
        %v319 = vpop.permute.xlu0 %318
        %v321 = vperm.slane %v275, 0
        %v322 = vmul.f32 %v307, %v321
        %v323 = vmul.f32 %v311, %v321
        %v324 = vmul.f32 %v315, %v321
        %v325 = vmul.f32 %v319, %v321
        %v326 = vadd.f32 %v301, %v322
        %v327 = vadd.f32 %v302, %v323
        %v328 = vadd.f32 %v303, %v324
        %v329 = vadd.f32 %v304, %v325
        %v330 = vld [vmem:[%s2] sm:$0xff]
        %v331 = vld [vmem:[%s2 + $0x8] sm:$0xff]
        %v332 = vld [vmem:[%s2 + $0x10] sm:$0xff]
        %v333 = vld [vmem:[%s2 + $0x18] sm:$0xff]
        %335 = vset.pattern.permute.xlu0 0
        %336 = vperm.xlu0 %335, %v330
        %v337 = vpop.permute.xlu0 %336
        %340 = vset.pattern.permute.xlu0 0
        %341 = vperm.xlu0 %340, %v331
        %v342 = vpop.permute.xlu0 %341
        %345 = vset.pattern.permute.xlu0 0
        %346 = vperm.xlu0 %345, %v332
        %v347 = vpop.permute.xlu0 %346
        %350 = vset.pattern.permute.xlu0 0
        %351 = vperm.xlu0 %350, %v333
        %v352 = vpop.permute.xlu0 %351
        %v354 = vadd.f32 %v326, %v337
        %v355 = vadd.f32 %v327, %v342
        %v356 = vadd.f32 %v328, %v347
        %v357 = vadd.f32 %v329, %v352
        %v358 = vtanh.pop %v354
        %v359 = vtanh.pop %v355
        %v360 = vtanh.pop %v356
        %v361 = vtanh.pop %v357
        %v362 = vmul.f32 %v354, %v358
        %v363 = vmul.f32 %v355, %v359
        %v364 = vmul.f32 %v356, %v360
        %v365 = vmul.f32 %v357, %v361
        %v366 = vld [vmem:[%s3] sm:$0xff]
        %v367 = vld [vmem:[%s3 + $0x8] sm:$0xff]
        %v368 = vld [vmem:[%s3 + $0x10] sm:$0xff]
        %v369 = vld [vmem:[%s3 + $0x18] sm:$0xff]
        %v370 = vld [vmem:[%s4] sm:$0xff]
        %v371 = vld [vmem:[%s4 + $0x8] sm:$0xff]
        %v372 = vld [vmem:[%s4 + $0x10] sm:$0xff]
        %v373 = vld [vmem:[%s4 + $0x18] sm:$0xff]
        %375 = vset.pattern.permute.xlu0 0
        %376 = vperm.xlu0 %375, %v370
        %v377 = vpop.permute.xlu0 %376
        %380 = vset.pattern.permute.xlu0 0
        %381 = vperm.xlu0 %380, %v371
        %v382 = vpop.permute.xlu0 %381
        %385 = vset.pattern.permute.xlu0 0
        %386 = vperm.xlu0 %385, %v372
        %v387 = vpop.permute.xlu0 %386
        %390 = vset.pattern.permute.xlu0 0
        %391 = vperm.xlu0 %390, %v373
        %v392 = vpop.permute.xlu0 %391
        %vm394 = vcmask 261120
        %v396 = vsel %vm394, %v366, 0
        %v399 = vsel %vm394, %v367, 0
        %v402 = vsel %vm394, %v368, 0
        %v405 = vsel %vm394, %v369, 0
        %407 = vmatpush.msra.mxu0 0.0
        %408 = vmatpush.msra.mxu0 0.0
        %409 = vmatpush.msra.mxu0 0.0
        %410 = vmatpush.msra.mxu0 0.0
        %411 = vmatpush.msra.mxu0 0.0
        %412 = vmatpush.msra.mxu0 0.0
        %413 = vmatpush.msra.mxu0 0.0
        %414 = vmatpush.msra.mxu0 0.0
        %415 = vmatpush.msra.mxu0 0.0
        %416 = vmatpush.msra.mxu0 0.0
        %417 = vmatpush.msra.mxu0 0.0
        %418 = vmatpush.msra.mxu0 0.0
        %419 = vmatpush.msra.mxu0 %v365
        %420 = vmatpush.msra.mxu0 %v364
        %421 = vmatpush.msra.mxu0 %v363
        %422 = vmatpush.msra.mxu0 %v362
        %423 = vmatmul.f32.gmra.mxu0 %v396
        %v424 = vpop.f32.mrf.mxu0
        %v425 = vadd.f32 %v377, %v424
        %426 = vmatmul.f32.gmra.mxu0 %v399
        %v427 = vpop.f32.mrf.mxu0
        %v428 = vadd.f32 %v382, %v427
        %429 = vmatmul.f32.gmra.mxu0 %v402
        %v430 = vpop.f32.mrf.mxu0
        %v431 = vadd.f32 %v387, %v430
        %432 = vmatmul.f32.gmra.mxu0 %v405
        %v433 = vpop.f32.mrf.mxu0
        %v434 = vadd.f32 %v392, %v433
        %435 = vdwg.mxu0
        %v436 = vtanh.pop %v425
        %v437 = vtanh.pop %v428
        %v438 = vtanh.pop %v431
        %v439 = vtanh.pop %v434
        %v440 = vmul.f32 %v425, %v436
        %v441 = vmul.f32 %v428, %v437
        %v442 = vmul.f32 %v431, %v438
        %v443 = vmul.f32 %v434, %v439
        %s444 = scalar_lea.vmem %s3, 32
        %v445 = vld [vmem:[%s444] sm:$0xff]
        %v446 = vld [vmem:[%s444 + $0x8] sm:$0xff]
        %v447 = vld [vmem:[%s444 + $0x10] sm:$0xff]
        %v448 = vld [vmem:[%s444 + $0x18] sm:$0xff]
        %s449 = scalar_lea.vmem %s4, 32
        %v450 = vld [vmem:[%s449] sm:$0xff]
        %v451 = vld [vmem:[%s449 + $0x8] sm:$0xff]
        %v452 = vld [vmem:[%s449 + $0x10] sm:$0xff]
        %v453 = vld [vmem:[%s449 + $0x18] sm:$0xff]
        %455 = vset.pattern.permute.xlu0 0
        %456 = vperm.xlu0 %455, %v450
        %v457 = vpop.permute.xlu0 %456
        %460 = vset.pattern.permute.xlu0 0
        %461 = vperm.xlu0 %460, %v451
        %v462 = vpop.permute.xlu0 %461
        %465 = vset.pattern.permute.xlu0 0
        %466 = vperm.xlu0 %465, %v452
        %v467 = vpop.permute.xlu0 %466
        %470 = vset.pattern.permute.xlu0 0
        %471 = vperm.xlu0 %470, %v453
        %v472 = vpop.permute.xlu0 %471
        %v475 = vsel %vm394, %v445, 0
        %v478 = vsel %vm394, %v446, 0
        %v481 = vsel %vm394, %v447, 0
        %v484 = vsel %vm394, %v448, 0
        %486 = vmatpush.msra.mxu0 0.0
        %487 = vmatpush.msra.mxu0 0.0
        %488 = vmatpush.msra.mxu0 0.0
        %489 = vmatpush.msra.mxu0 0.0
        %490 = vmatpush.msra.mxu0 0.0
        %491 = vmatpush.msra.mxu0 0.0
        %492 = vmatpush.msra.mxu0 0.0
        %493 = vmatpush.msra.mxu0 0.0
        %494 = vmatpush.msra.mxu0 0.0
        %495 = vmatpush.msra.mxu0 0.0
        %496 = vmatpush.msra.mxu0 0.0
        %497 = vmatpush.msra.mxu0 0.0
        %498 = vmatpush.msra.mxu0 %v443
        %499 = vmatpush.msra.mxu0 %v442
        %500 = vmatpush.msra.mxu0 %v441
        %501 = vmatpush.msra.mxu0 %v440
        %502 = vmatmul.f32.gmra.mxu0 %v475
        %v503 = vpop.f32.mrf.mxu0
        %v504 = vadd.f32 %v457, %v503
        %505 = vmatmul.f32.gmra.mxu0 %v478
        %v506 = vpop.f32.mrf.mxu0
        %v507 = vadd.f32 %v462, %v506
        %508 = vmatmul.f32.gmra.mxu0 %v481
        %v509 = vpop.f32.mrf.mxu0
        %v510 = vadd.f32 %v467, %v509
        %511 = vmatmul.f32.gmra.mxu0 %v484
        %v512 = vpop.f32.mrf.mxu0
        %v513 = vadd.f32 %v472, %v512
        %514 = vdwg.mxu0
        %v515 = vtanh.pop %v504
        %v516 = vtanh.pop %v507
        %v517 = vtanh.pop %v510
        %v518 = vtanh.pop %v513
        %v519 = vmul.f32 %v504, %v515
        %v520 = vmul.f32 %v507, %v516
        %v521 = vmul.f32 %v510, %v517
        %v522 = vmul.f32 %v513, %v518
        %s523 = scalar_lea.vmem %s3, 64
        %v524 = vld [vmem:[%s523] sm:$0xff]
        %v525 = vld [vmem:[%s523 + $0x8] sm:$0xff]
        %v526 = vld [vmem:[%s523 + $0x10] sm:$0xff]
        %v527 = vld [vmem:[%s523 + $0x18] sm:$0xff]
        %s528 = scalar_lea.vmem %s4, 64
        %v529 = vld [vmem:[%s528] sm:$0xff]
        %v530 = vld [vmem:[%s528 + $0x8] sm:$0xff]
        %v531 = vld [vmem:[%s528 + $0x10] sm:$0xff]
        %v532 = vld [vmem:[%s528 + $0x18] sm:$0xff]
        %534 = vset.pattern.permute.xlu0 0
        %535 = vperm.xlu0 %534, %v529
        %v536 = vpop.permute.xlu0 %535
        %539 = vset.pattern.permute.xlu0 0
        %540 = vperm.xlu0 %539, %v530
        %v541 = vpop.permute.xlu0 %540
        %544 = vset.pattern.permute.xlu0 0
        %545 = vperm.xlu0 %544, %v531
        %v546 = vpop.permute.xlu0 %545
        %549 = vset.pattern.permute.xlu0 0
        %550 = vperm.xlu0 %549, %v532
        %v551 = vpop.permute.xlu0 %550
        %v554 = vsel %vm394, %v524, 0
        %v557 = vsel %vm394, %v525, 0
        %v560 = vsel %vm394, %v526, 0
        %v563 = vsel %vm394, %v527, 0
        %565 = vmatpush.msra.mxu0 0.0
        %566 = vmatpush.msra.mxu0 0.0
        %567 = vmatpush.msra.mxu0 0.0
        %568 = vmatpush.msra.mxu0 0.0
        %569 = vmatpush.msra.mxu0 0.0
        %570 = vmatpush.msra.mxu0 0.0
        %571 = vmatpush.msra.mxu0 0.0
        %572 = vmatpush.msra.mxu0 0.0
        %573 = vmatpush.msra.mxu0 0.0
        %574 = vmatpush.msra.mxu0 0.0
        %575 = vmatpush.msra.mxu0 0.0
        %576 = vmatpush.msra.mxu0 0.0
        %577 = vmatpush.msra.mxu0 %v522
        %578 = vmatpush.msra.mxu0 %v521
        %579 = vmatpush.msra.mxu0 %v520
        %580 = vmatpush.msra.mxu0 %v519
        %581 = vmatmul.f32.gmra.mxu0 %v554
        %v582 = vpop.f32.mrf.mxu0
        %v583 = vadd.f32 %v536, %v582
        %584 = vmatmul.f32.gmra.mxu0 %v557
        %v585 = vpop.f32.mrf.mxu0
        %v586 = vadd.f32 %v541, %v585
        %587 = vmatmul.f32.gmra.mxu0 %v560
        %v588 = vpop.f32.mrf.mxu0
        %v589 = vadd.f32 %v546, %v588
        %590 = vmatmul.f32.gmra.mxu0 %v563
        %v591 = vpop.f32.mrf.mxu0
        %v592 = vadd.f32 %v551, %v591
        %593 = vdwg.mxu0
        %v594 = vtanh.pop %v583
        %v595 = vtanh.pop %v586
        %v596 = vtanh.pop %v589
        %v597 = vtanh.pop %v592
        %v598 = vmul.f32 %v583, %v594
        %v599 = vmul.f32 %v586, %v595
        %v600 = vmul.f32 %v589, %v596
        %v601 = vmul.f32 %v592, %v597
        %s602 = scalar_lea.vmem %s3, 96
        %v603 = vld [vmem:[%s602] sm:$0xff]
        %v604 = vld [vmem:[%s602 + $0x8] sm:$0xff]
        %v605 = vld [vmem:[%s602 + $0x10] sm:$0xff]
        %v606 = vld [vmem:[%s602 + $0x18] sm:$0xff]
        %s607 = scalar_lea.vmem %s4, 96
        %v608 = vld [vmem:[%s607] sm:$0xff]
        %v609 = vld [vmem:[%s607 + $0x8] sm:$0xff]
        %v610 = vld [vmem:[%s607 + $0x10] sm:$0xff]
        %v611 = vld [vmem:[%s607 + $0x18] sm:$0xff]
        %613 = vset.pattern.permute.xlu0 0
        %614 = vperm.xlu0 %613, %v608
        %v615 = vpop.permute.xlu0 %614
        %618 = vset.pattern.permute.xlu0 0
        %619 = vperm.xlu0 %618, %v609
        %v620 = vpop.permute.xlu0 %619
        %623 = vset.pattern.permute.xlu0 0
        %624 = vperm.xlu0 %623, %v610
        %v625 = vpop.permute.xlu0 %624
        %628 = vset.pattern.permute.xlu0 0
        %629 = vperm.xlu0 %628, %v611
        %v630 = vpop.permute.xlu0 %629
        %v633 = vsel %vm394, %v603, 0
        %v636 = vsel %vm394, %v604, 0
        %v639 = vsel %vm394, %v605, 0
        %v642 = vsel %vm394, %v606, 0
        %644 = vmatpush.msra.mxu0 0.0
        %645 = vmatpush.msra.mxu0 0.0
        %646 = vmatpush.msra.mxu0 0.0
        %647 = vmatpush.msra.mxu0 0.0
        %648 = vmatpush.msra.mxu0 0.0
        %649 = vmatpush.msra.mxu0 0.0
        %650 = vmatpush.msra.mxu0 0.0
        %651 = vmatpush.msra.mxu0 0.0
        %652 = vmatpush.msra.mxu0 0.0
        %653 = vmatpush.msra.mxu0 0.0
        %654 = vmatpush.msra.mxu0 0.0
        %655 = vmatpush.msra.mxu0 0.0
        %656 = vmatpush.msra.mxu0 %v601
        %657 = vmatpush.msra.mxu0 %v600
        %658 = vmatpush.msra.mxu0 %v599
        %659 = vmatpush.msra.mxu0 %v598
        %660 = vmatmul.f32.gmra.mxu0 %v633
        %v661 = vpop.f32.mrf.mxu0
        %v662 = vadd.f32 %v615, %v661
        %663 = vmatmul.f32.gmra.mxu0 %v636
        %v664 = vpop.f32.mrf.mxu0
        %v665 = vadd.f32 %v620, %v664
        %666 = vmatmul.f32.gmra.mxu0 %v639
        %v667 = vpop.f32.mrf.mxu0
        %v668 = vadd.f32 %v625, %v667
        %669 = vmatmul.f32.gmra.mxu0 %v642
        %v670 = vpop.f32.mrf.mxu0
        %v671 = vadd.f32 %v630, %v670
        %672 = vdwg.mxu0
        %v673 = vtanh.pop %v662
        %v674 = vtanh.pop %v665
        %v675 = vtanh.pop %v668
        %v676 = vtanh.pop %v671
        %v677 = vmul.f32 %v662, %v673
        %v678 = vmul.f32 %v665, %v674
        %v679 = vmul.f32 %v668, %v675
        %v680 = vmul.f32 %v671, %v676
        %s681 = scalar_lea.vmem %s3, 128
        %v682 = vld [vmem:[%s681] sm:$0xff]
        %v683 = vld [vmem:[%s681 + $0x8] sm:$0xff]
        %v684 = vld [vmem:[%s681 + $0x10] sm:$0xff]
        %v685 = vld [vmem:[%s681 + $0x18] sm:$0xff]
        %s686 = scalar_lea.vmem %s4, 128
        %v687 = vld [vmem:[%s686] sm:$0xff]
        %v688 = vld [vmem:[%s686 + $0x8] sm:$0xff]
        %v689 = vld [vmem:[%s686 + $0x10] sm:$0xff]
        %v690 = vld [vmem:[%s686 + $0x18] sm:$0xff]
        %692 = vset.pattern.permute.xlu0 0
        %693 = vperm.xlu0 %692, %v687
        %v694 = vpop.permute.xlu0 %693
        %697 = vset.pattern.permute.xlu0 0
        %698 = vperm.xlu0 %697, %v688
        %v699 = vpop.permute.xlu0 %698
        %702 = vset.pattern.permute.xlu0 0
        %703 = vperm.xlu0 %702, %v689
        %v704 = vpop.permute.xlu0 %703
        %707 = vset.pattern.permute.xlu0 0
        %708 = vperm.xlu0 %707, %v690
        %v709 = vpop.permute.xlu0 %708
        %v712 = vsel %vm394, %v682, 0
        %v715 = vsel %vm394, %v683, 0
        %v718 = vsel %vm394, %v684, 0
        %v721 = vsel %vm394, %v685, 0
        %723 = vmatpush.msra.mxu0 0.0
        %724 = vmatpush.msra.mxu0 0.0
        %725 = vmatpush.msra.mxu0 0.0
        %726 = vmatpush.msra.mxu0 0.0
        %727 = vmatpush.msra.mxu0 0.0
        %728 = vmatpush.msra.mxu0 0.0
        %729 = vmatpush.msra.mxu0 0.0
        %730 = vmatpush.msra.mxu0 0.0
        %731 = vmatpush.msra.mxu0 0.0
        %732 = vmatpush.msra.mxu0 0.0
        %733 = vmatpush.msra.mxu0 0.0
        %734 = vmatpush.msra.mxu0 0.0
        %735 = vmatpush.msra.mxu0 %v680
        %736 = vmatpush.msra.mxu0 %v679
        %737 = vmatpush.msra.mxu0 %v678
        %738 = vmatpush.msra.mxu0 %v677
        %739 = vmatmul.f32.gmra.mxu0 %v712
        %v740 = vpop.f32.mrf.mxu0
        %v741 = vadd.f32 %v694, %v740
        %742 = vmatmul.f32.gmra.mxu0 %v715
        %v743 = vpop.f32.mrf.mxu0
        %v744 = vadd.f32 %v699, %v743
        %745 = vmatmul.f32.gmra.mxu0 %v718
        %v746 = vpop.f32.mrf.mxu0
        %v747 = vadd.f32 %v704, %v746
        %748 = vmatmul.f32.gmra.mxu0 %v721
        %v749 = vpop.f32.mrf.mxu0
        %v750 = vadd.f32 %v709, %v749
        %751 = vdwg.mxu0
        %v752 = vtanh.pop %v741
        %v753 = vtanh.pop %v744
        %v754 = vtanh.pop %v747
        %v755 = vtanh.pop %v750
        %v756 = vmul.f32 %v741, %v752
        %v757 = vmul.f32 %v744, %v753
        %v758 = vmul.f32 %v747, %v754
        %v759 = vmul.f32 %v750, %v755
        %s760 = scalar_lea.vmem %s3, 160
        %v761 = vld [vmem:[%s760] sm:$0xff]
        %v762 = vld [vmem:[%s760 + $0x8] sm:$0xff]
        %v763 = vld [vmem:[%s760 + $0x10] sm:$0xff]
        %v764 = vld [vmem:[%s760 + $0x18] sm:$0xff]
        %s765 = scalar_lea.vmem %s4, 160
        %v766 = vld [vmem:[%s765] sm:$0xff]
        %v767 = vld [vmem:[%s765 + $0x8] sm:$0xff]
        %v768 = vld [vmem:[%s765 + $0x10] sm:$0xff]
        %v769 = vld [vmem:[%s765 + $0x18] sm:$0xff]
        %771 = vset.pattern.permute.xlu0 0
        %772 = vperm.xlu0 %771, %v766
        %v773 = vpop.permute.xlu0 %772
        %776 = vset.pattern.permute.xlu0 0
        %777 = vperm.xlu0 %776, %v767
        %v778 = vpop.permute.xlu0 %777
        %781 = vset.pattern.permute.xlu0 0
        %782 = vperm.xlu0 %781, %v768
        %v783 = vpop.permute.xlu0 %782
        %786 = vset.pattern.permute.xlu0 0
        %787 = vperm.xlu0 %786, %v769
        %v788 = vpop.permute.xlu0 %787
        %v791 = vsel %vm394, %v761, 0
        %v794 = vsel %vm394, %v762, 0
        %v797 = vsel %vm394, %v763, 0
        %v800 = vsel %vm394, %v764, 0
        %802 = vmatpush.msra.mxu0 0.0
        %803 = vmatpush.msra.mxu0 0.0
        %804 = vmatpush.msra.mxu0 0.0
        %805 = vmatpush.msra.mxu0 0.0
        %806 = vmatpush.msra.mxu0 0.0
        %807 = vmatpush.msra.mxu0 0.0
        %808 = vmatpush.msra.mxu0 0.0
        %809 = vmatpush.msra.mxu0 0.0
        %810 = vmatpush.msra.mxu0 0.0
        %811 = vmatpush.msra.mxu0 0.0
        %812 = vmatpush.msra.mxu0 0.0
        %813 = vmatpush.msra.mxu0 0.0
        %814 = vmatpush.msra.mxu0 %v759
        %815 = vmatpush.msra.mxu0 %v758
        %816 = vmatpush.msra.mxu0 %v757
        %817 = vmatpush.msra.mxu0 %v756
        %818 = vmatmul.f32.gmra.mxu0 %v791
        %v819 = vpop.f32.mrf.mxu0
        %v820 = vadd.f32 %v773, %v819
        %821 = vmatmul.f32.gmra.mxu0 %v794
        %v822 = vpop.f32.mrf.mxu0
        %v823 = vadd.f32 %v778, %v822
        %824 = vmatmul.f32.gmra.mxu0 %v797
        %v825 = vpop.f32.mrf.mxu0
        %v826 = vadd.f32 %v783, %v825
        %827 = vmatmul.f32.gmra.mxu0 %v800
        %v828 = vpop.f32.mrf.mxu0
        %v829 = vadd.f32 %v788, %v828
        %830 = vdwg.mxu0
        %v831 = vtanh.pop %v820
        %v832 = vtanh.pop %v823
        %v833 = vtanh.pop %v826
        %v834 = vtanh.pop %v829
        %v835 = vmul.f32 %v820, %v831
        %v836 = vmul.f32 %v823, %v832
        %v837 = vmul.f32 %v826, %v833
        %v838 = vmul.f32 %v829, %v834
        %s839 = scalar_lea.vmem %s3, 192
        %v840 = vld [vmem:[%s839] sm:$0xff]
        %v841 = vld [vmem:[%s839 + $0x8] sm:$0xff]
        %v842 = vld [vmem:[%s839 + $0x10] sm:$0xff]
        %v843 = vld [vmem:[%s839 + $0x18] sm:$0xff]
        %s844 = scalar_lea.vmem %s4, 192
        %v845 = vld [vmem:[%s844] sm:$0xff]
        %v846 = vld [vmem:[%s844 + $0x8] sm:$0xff]
        %v847 = vld [vmem:[%s844 + $0x10] sm:$0xff]
        %v848 = vld [vmem:[%s844 + $0x18] sm:$0xff]
        %850 = vset.pattern.permute.xlu0 0
        %851 = vperm.xlu0 %850, %v845
        %v852 = vpop.permute.xlu0 %851
        %855 = vset.pattern.permute.xlu0 0
        %856 = vperm.xlu0 %855, %v846
        %v857 = vpop.permute.xlu0 %856
        %860 = vset.pattern.permute.xlu0 0
        %861 = vperm.xlu0 %860, %v847
        %v862 = vpop.permute.xlu0 %861
        %865 = vset.pattern.permute.xlu0 0
        %866 = vperm.xlu0 %865, %v848
        %v867 = vpop.permute.xlu0 %866
        %v870 = vsel %vm394, %v840, 0
        %v873 = vsel %vm394, %v841, 0
        %v876 = vsel %vm394, %v842, 0
        %v879 = vsel %vm394, %v843, 0
        %881 = vmatpush.msra.mxu0 0.0
        %882 = vmatpush.msra.mxu0 0.0
        %883 = vmatpush.msra.mxu0 0.0
        %884 = vmatpush.msra.mxu0 0.0
        %885 = vmatpush.msra.mxu0 0.0
        %886 = vmatpush.msra.mxu0 0.0
        %887 = vmatpush.msra.mxu0 0.0
        %888 = vmatpush.msra.mxu0 0.0
        %889 = vmatpush.msra.mxu0 0.0
        %890 = vmatpush.msra.mxu0 0.0
        %891 = vmatpush.msra.mxu0 0.0
        %892 = vmatpush.msra.mxu0 0.0
        %893 = vmatpush.msra.mxu0 %v838
        %894 = vmatpush.msra.mxu0 %v837
        %895 = vmatpush.msra.mxu0 %v836
        %896 = vmatpush.msra.mxu0 %v835
        %897 = vmatmul.f32.gmra.mxu0 %v870
        %v898 = vpop.f32.mrf.mxu0
        %v899 = vadd.f32 %v852, %v898
        %900 = vmatmul.f32.gmra.mxu0 %v873
        %v901 = vpop.f32.mrf.mxu0
        %v902 = vadd.f32 %v857, %v901
        %903 = vmatmul.f32.gmra.mxu0 %v876
        %v904 = vpop.f32.mrf.mxu0
        %v905 = vadd.f32 %v862, %v904
        %906 = vmatmul.f32.gmra.mxu0 %v879
        %v907 = vpop.f32.mrf.mxu0
        %v908 = vadd.f32 %v867, %v907
        %909 = vdwg.mxu0
        %v910 = vtanh.pop %v899
        %v911 = vtanh.pop %v902
        %v912 = vtanh.pop %v905
        %v913 = vtanh.pop %v908
        %v914 = vmul.f32 %v899, %v910
        %v915 = vmul.f32 %v902, %v911
        %v916 = vmul.f32 %v905, %v912
        %v917 = vmul.f32 %v908, %v913
        %s918 = scalar_lea.vmem %s3, 224
        %v919 = vld [vmem:[%s918] sm:$0xff]
        %v920 = vld [vmem:[%s918 + $0x8] sm:$0xff]
        %v921 = vld [vmem:[%s918 + $0x10] sm:$0xff]
        %v922 = vld [vmem:[%s918 + $0x18] sm:$0xff]
        %s923 = scalar_lea.vmem %s4, 224
        %v924 = vld [vmem:[%s923] sm:$0xff]
        %v925 = vld [vmem:[%s923 + $0x8] sm:$0xff]
        %v926 = vld [vmem:[%s923 + $0x10] sm:$0xff]
        %v927 = vld [vmem:[%s923 + $0x18] sm:$0xff]
        %929 = vset.pattern.permute.xlu0 0
        %930 = vperm.xlu0 %929, %v924
        %v931 = vpop.permute.xlu0 %930
        %934 = vset.pattern.permute.xlu0 0
        %935 = vperm.xlu0 %934, %v925
        %v936 = vpop.permute.xlu0 %935
        %939 = vset.pattern.permute.xlu0 0
        %940 = vperm.xlu0 %939, %v926
        %v941 = vpop.permute.xlu0 %940
        %944 = vset.pattern.permute.xlu0 0
        %945 = vperm.xlu0 %944, %v927
        %v946 = vpop.permute.xlu0 %945
        %v949 = vsel %vm394, %v919, 0
        %v952 = vsel %vm394, %v920, 0
        %v955 = vsel %vm394, %v921, 0
        %v958 = vsel %vm394, %v922, 0
        %960 = vmatpush.msra.mxu0 0.0
        %961 = vmatpush.msra.mxu0 0.0
        %962 = vmatpush.msra.mxu0 0.0
        %963 = vmatpush.msra.mxu0 0.0
        %964 = vmatpush.msra.mxu0 0.0
        %965 = vmatpush.msra.mxu0 0.0
        %966 = vmatpush.msra.mxu0 0.0
        %967 = vmatpush.msra.mxu0 0.0
        %968 = vmatpush.msra.mxu0 0.0
        %969 = vmatpush.msra.mxu0 0.0
        %970 = vmatpush.msra.mxu0 0.0
        %971 = vmatpush.msra.mxu0 0.0
        %972 = vmatpush.msra.mxu0 %v917
        %973 = vmatpush.msra.mxu0 %v916
        %974 = vmatpush.msra.mxu0 %v915
        %975 = vmatpush.msra.mxu0 %v914
        %976 = vmatmul.f32.gmra.mxu0 %v949
        %v977 = vpop.f32.mrf.mxu0
        %v978 = vadd.f32 %v931, %v977
        %979 = vmatmul.f32.gmra.mxu0 %v952
        %v980 = vpop.f32.mrf.mxu0
        %v981 = vadd.f32 %v936, %v980
        %982 = vmatmul.f32.gmra.mxu0 %v955
        %v983 = vpop.f32.mrf.mxu0
        %v984 = vadd.f32 %v941, %v983
        %985 = vmatmul.f32.gmra.mxu0 %v958
        %v986 = vpop.f32.mrf.mxu0
        %v987 = vadd.f32 %v946, %v986
        %988 = vdwg.mxu0
        %v989 = vtanh.pop %v978
        %v990 = vtanh.pop %v981
        %v991 = vtanh.pop %v984
        %v992 = vtanh.pop %v987
        %v993 = vmul.f32 %v978, %v989
        %v994 = vmul.f32 %v981, %v990
        %v995 = vmul.f32 %v984, %v991
        %v996 = vmul.f32 %v987, %v992
        %v997 = vld [vmem:[%s5] sm:$0xff]
        %v998 = vld [vmem:[%s5 + $0x8] sm:$0xff]
        %v999 = vld [vmem:[%s5 + $0x10] sm:$0xff]
        %v1000 = vld [vmem:[%s5 + $0x18] sm:$0xff]
        %1002 = vset.pattern.permute.xlu0 0
        %1003 = vperm.xlu0 %1002, %v997
        %v1004 = vpop.permute.xlu0 %1003
        %1007 = vset.pattern.permute.xlu0 0
        %1008 = vperm.xlu0 %1007, %v998
        %v1009 = vpop.permute.xlu0 %1008
        %1012 = vset.pattern.permute.xlu0 0
        %1013 = vperm.xlu0 %1012, %v999
        %v1014 = vpop.permute.xlu0 %1013
        %1017 = vset.pattern.permute.xlu0 0
        %1018 = vperm.xlu0 %1017, %v1000
        %v1019 = vpop.permute.xlu0 %1018
        %v1021 = vmul.f32 %v1004, %v993
        %v1022 = vmul.f32 %v1009, %v994
        %v1023 = vmul.f32 %v1014, %v995
        %v1024 = vmul.f32 %v1019, %v996
        %v1025 = vadd.f32 %v1021, %v1022
        %v1026 = vadd.f32 %v1025, %v1023
        %v1027 = vadd.f32 %v1026, %v1024
        %v1028 = vrot.slane %v1027, 4
        %v1029 = vadd.f32 %v1027, %v1028
        %v1030 = vrot.slane %v1029, 2
        %v1031 = vadd.f32 %v1029, %v1030
        %v1032 = vrot.slane %v1031, 1
        %v1033 = vadd.f32 %v1031, %v1032
        %s1034 = sld [smem:[#allocation2]]
        %v1035 = vstv %s1034
        %v1036 = vadd.f32 %v1033, %v1035
        %v1037 = vmax.f32 %v274, 1e-30
        %vm1038 = vcmp.gt.f32.partialorder %v274, 0.0
        %v1039 = vlog2.pop %v1037
        %v1040 = vmul.f32 %v1039, 0.6931472
        %v1041 = vmul.f32 %v1040, 0.9
        %v1042 = vmul.f32 %v1041, 1.442695
        %v1043 = vpow.pop %v1042
        %v1044 = vsel %vm1038, %v1043, 0.0
        %v1045 = vsub.f32 1.0, %v275
        %v1046 = vmul.f32 %v275, %v1045
        %v1047 = vmul.f32 %v1044, %v1046
        %v1048 = vmul.f32 %v1047, %v1036
        %1049 = vst [vmem:[%s269] sm:$0x1] %v1048
        %s1050 = sand.u32 %s182, 1
        %s1051 = scalar_lea.sflag [#allocation4], %s1050
        %s1052 = sand.u32 %s182, 1
        %s1053 = scalar_lea.vmem [#allocation3], %s1052
        // Predicated region
        $region49: #{tpu_custom_call.1} parent=47 // pred_check
          %p1054 = pneg %p192
        $region50: #{tpu_custom_call.1} parent=47 // pred_check_branch
          %1056 = sbr.rel (%p1054) target = $region52
        $region51: #{tpu_custom_call.1} parent=47 // pred_region
          %1058 = vsyncadd %s1051, 0
          %s1059 = scalar_lea.hbm %s7, %s22
          %s1061 = sshll.u32 %s1053, 4
          %s1062 = int_to_ptr.vmem [resolvable:$true] %s1061
          %s1063 = sshll.u32 %s1059, 4
          %s1064 = int_to_ptr.hbm [resolvable:$true] %s1063
          %1066 = dma.vmem_to_hbm [thread:$0]  %s1062, 16, %s1064, %s1051
        $region52: #{tpu_custom_call.1} parent=47 // pred_fallthru
          _
      $region48: #{tpu_custom_call.1} parent=5 // pred_fallthru
        _
      %p1067 = scmp.le.s32.totalorder 2, %s17
      // Predicated region
      $region53: #{tpu_custom_call.1} parent=5 // pred_check
        %p1068 = pneg %p1067
      $region54: #{tpu_custom_call.1} parent=5 // pred_check_branch
        %1070 = sbr.rel (%p1068) target = $region56
      $region55: #{tpu_custom_call.1} parent=5 // pred_region
        %s1071 = ssub.s32 %s17, 2
        // Predicated region
        $region57: #{tpu_custom_call.1} parent=55 // pred_check
          %p1072 = pneg %p198
        $region58: #{tpu_custom_call.1} parent=55 // pred_check_branch
          %1074 = sbr.rel (%p1072) target = $region60
        $region59: #{tpu_custom_call.1} parent=55 // pred_region
          %s1075 = sand.u32 %s183, 1
          %s1076 = scalar_lea.sflag [#allocation4], %s1075
          %s1077 = sand.u32 %s183, 1
          %s1078 = scalar_lea.vmem [#allocation3], %s1077
          %1080 = dma.done %s1076, 16
        $region60: #{tpu_custom_call.1} parent=55 // pred_fallthru
          _
      $region56: #{tpu_custom_call.1} parent=5 // pred_fallthru
        _
    $region6: #{tpu_custom_call.1} parent=1 // loop_footer
      %s21 = sadd.s32 1, %s17
    $region7: #{tpu_custom_call.1} parent=1 // loop_footer_branch
      %16 = sbr.rel target = $region3
    $region8: #{tpu_custom_call.1} parent=1 // loop_exit
      _
    %1081 = vsyncpa [#allocation4], 1
    %s1082 = scalar_lea.sflag [#allocation4], 1
    %1083 = vsyncpa %s1082, 1

</llo_original>
